<compile_context>
chip_gen: v7x
topology: tpu7x:2x2x1
jax: 0.10.0
libtpu: 0.0.40
codegen_flags: <defaults>
</compile_context>

<pallas_src>
import jax
import jax.numpy as jnp
from jax.experimental import pallas as pl
from jax.experimental.pallas import tpu as pltpu


def _round_up(x, m):
    return ((x + m - 1) // m) * m


def _pad2d(x, rows, cols, dtype):
    x = x.astype(dtype)
    pr, pc = rows - x.shape[0], cols - x.shape[1]
    if pr or pc:
        x = jnp.pad(x, ((0, pr), (0, pc)))
    return x


def graphconv_kernel(adj_ref, feat_ref, norm0_ref, w_ref, b_ref, o_ref, acc_ref):
    k = pl.program_id(1)

    @pl.when(k == 0)
    def _init():
        acc_ref[...] = jnp.zeros_like(acc_ref)

    # Accumulate adj_tile @ (feat_k * norm0_k) in f32.  Scaling is done on the
    # small (tk, F_in) feat tile (once per k-tile, not per row-tile).
    feat_scaled = (feat_ref[...].astype(jnp.float32) * norm0_ref[...]).astype(
        adj_ref.dtype)
    acc_ref[...] += jnp.dot(adj_ref[...], feat_scaled,
                            preferred_element_type=jnp.float32)

    @pl.when(k == pl.num_programs(1) - 1)
    def _finalize():
        # Projection, bias add and ReLU happen exactly once per output tile.
        h = jnp.dot(acc_ref[...], w_ref[...], preferred_element_type=jnp.float32)
        o_ref[...] = jnp.maximum(h + b_ref[...], 0.0).astype(o_ref.dtype)


def graph_conv(adj, feat, norm0, weight, bias, *, tm=128, tk=512,
               compute_dtype=jnp.float32):
    """Fused GraphConv forward: relu(adj @ (feat*norm0) @ W + b)."""
    N, f_in = feat.shape
    f_out = weight.shape[1]

    # Tile sizes: tm rows per output tile (multiple of 8), tk adjacency columns
    # per reduction step (multiple of 128, dividing the padded node count).
    tm = max(8, _round_up(tm, 8))
    tk = max(128, (tk // 128) * 128)
    n_pad = _round_up(N, tm)
    tk = min(tk, n_pad)
    while n_pad % tk != 0:
        tk -= 128
    f_out_p = _round_up(f_out, 128)          # lane-dense output stores

    if norm0 is None:
        norm0 = jnp.ones((N, 1), dtype=jnp.float32)
    norm0 = norm0.reshape(N, 1)

    # Zero-padding is exact: padded adj columns are zero (contribute nothing),
    # padded output rows / columns are sliced off below.
    adj_p = _pad2d(adj, n_pad, n_pad, compute_dtype)
    feat_p = _pad2d(feat, n_pad, f_in, compute_dtype)
    norm0_p = _pad2d(norm0, n_pad, 1, jnp.float32)
    w_p = _pad2d(weight, f_in, f_out_p, jnp.float32)
    b_p = _pad2d(bias.reshape(1, f_out), 1, f_out_p, jnp.float32)

    grid = (n_pad // tm, n_pad // tk)

    out = pl.pallas_call(
        graphconv_kernel,
        out_shape=jax.ShapeDtypeStruct((n_pad, f_out_p), jnp.float32),
        grid_spec=pltpu.PrefetchScalarGridSpec(
            num_scalar_prefetch=0,
            grid=grid,
            in_specs=[
                pl.BlockSpec((tm, tk), lambda i, k: (i, k)),         # adj tile
                pl.BlockSpec((tk, f_in), lambda i, k: (k, 0)),       # feat k-tile
                pl.BlockSpec((tk, 1), lambda i, k: (k, 0)),          # norm0 k-tile
                pl.BlockSpec((f_in, f_out_p), lambda i, k: (0, 0)),  # weight
                pl.BlockSpec((1, f_out_p), lambda i, k: (0, 0)),     # bias
            ],
            out_specs=pl.BlockSpec((tm, f_out_p), lambda i, k: (i, 0)),
            scratch_shapes=[pltpu.VMEM((tm, f_in), jnp.float32)],    # accumulator
        ),
        compiler_params=pltpu.CompilerParams(
            dimension_semantics=("parallel", "arbitrary"),
            vmem_limit_bytes=32 * 1024 * 1024,
        ),
    )(adj_p, feat_p, norm0_p, w_p, b_p)

    return out[:N, :f_out]


def graph_conv_ref(adj, feat, norm0, weight, bias):
    feat = feat * norm0
    feat = feat @ weight
    rst = adj @ feat
    rst = rst + bias
    return jnp.maximum(rst, 0.0)


if __name__ == "__main__":
    key = jax.random.PRNGKey(0)
    k_adj, k_feat, k_w = jax.random.split(key, 3)

    N, in_feats, out_feats = 128, 32, 64

    # Synthetic normalized adjacency (dense, nonnegative, self-loops).
    adj_raw = (jax.random.uniform(k_adj, (N, N)) > 0.9).astype(jnp.float32)
    adj_raw = jnp.minimum(adj_raw + jnp.eye(N, dtype=jnp.float32), 1.0)
    deg = jnp.sum(adj_raw, axis=1, keepdims=True)
    adj = adj_raw / deg                                  # row-normalized adjacency

    # Node features and symmetric-norm vector (norm[0]).
    feat = jax.random.normal(k_feat, (N, in_feats), dtype=jnp.float32)
    norm0 = jax.lax.rsqrt(deg)                           # [N, 1]

    # Deterministic parameter init matching nn.init.xavier_uniform_ / zeros_.
    bound = (6.0 / (in_feats + out_feats)) ** 0.5
    weight = jax.random.uniform(k_w, (in_feats, out_feats),
                                minval=-bound, maxval=bound, dtype=jnp.float32)
    bias = jnp.zeros((out_feats,), dtype=jnp.float32)

    ref = graph_conv_ref(adj, feat, norm0, weight, bias)

    # f32 path: exact forward semantics.
    out = graph_conv(adj, feat, norm0, weight, bias)
    out = jax.block_until_ready(out)
    assert out.shape == (N, out_feats)
    assert jnp.allclose(out, ref, atol=1e-4, rtol=1e-4)

    # bf16-streamed path (halved adj HBM traffic, bf16-native MXU), f32 accumulation.
    out_bf16 = graph_conv(adj, feat, norm0, weight, bias,
                          compute_dtype=jnp.bfloat16)
    out_bf16 = jax.block_until_ready(out_bf16)
    assert jnp.allclose(out_bf16, ref, atol=5e-2, rtol=5e-2)

    print("KERNEL_OK")
</pallas_src>

<mosaic_0001>
module attributes {stable_mosaic.version = 11 : i64} {
  func.func @graphconv_kernel(%arg0: i32, %arg1: i32, %arg2: memref<128x128xf32, #tpu.memory_space<vmem>>, %arg3: memref<128x32xf32, #tpu.memory_space<vmem>>, %arg4: memref<128x1xf32, #tpu.memory_space<vmem>>, %arg5: memref<32x128xf32, #tpu.memory_space<vmem>>, %arg6: memref<1x128xf32, #tpu.memory_space<vmem>>, %arg7: memref<128x128xf32, #tpu.memory_space<vmem>>, %arg8: memref<128x32xf32, #tpu.memory_space<vmem>>) attributes {dimension_semantics = [#tpu.dimension_semantics<parallel>, #tpu.dimension_semantics<arbitrary>], iteration_bounds = array<i64: 1, 1>, scalar_prefetch = 0 : i64, scratch_operands = 1 : i64, tpu.core_type = #tpu.core_type<tc>, window_params = [{transform_indices = @transform_0, window_bounds = array<i64: 128, 128>}, {transform_indices = @transform_1, window_bounds = array<i64: 128, 32>}, {transform_indices = @transform_2, window_bounds = array<i64: 128, 1>}, {pipeline_mode = #tpu.pipeline_mode<synchronous>, transform_indices = @transform_3, window_bounds = array<i64: 32, 128>}, {pipeline_mode = #tpu.pipeline_mode<synchronous>, transform_indices = @transform_4, window_bounds = array<i64: 1, 128>}, {transform_indices = @transform_5, window_bounds = array<i64: 128, 128>}]} {
    %c0_i32 = arith.constant 0 : i32
    %0 = arith.cmpi eq, %arg1, %c0_i32 : i32
    %1 = arith.extui %0 : i1 to i32
    %c0_i32_0 = arith.constant 0 : i32
    %2 = arith.cmpi ne, %1, %c0_i32_0 : i32
    scf.if %2 {
      %cst_12 = arith.constant 0.000000e+00 : f32
      %15 = vector.broadcast %cst_12 : f32 to vector<128x32xf32>
      %c0_13 = arith.constant 0 : index
      %c0_14 = arith.constant 0 : index
      %16 = vector.load %arg8[%c0_13, %c0_14] : memref<128x32xf32, #tpu.memory_space<vmem>>, vector<128x32xf32>
      tpu.vector_store %arg8[%c0_13, %c0_14], %15 {strides = array<i32>} : memref<128x32xf32, #tpu.memory_space<vmem>>, vector<128x32xf32>,
    } else {
    }
    %c0 = arith.constant 0 : index
    %c0_1 = arith.constant 0 : index
    %3 = vector.load %arg3[%c0, %c0_1] : memref<128x32xf32, #tpu.memory_space<vmem>>, vector<128x32xf32>
    %c0_2 = arith.constant 0 : index
    %c0_3 = arith.constant 0 : index
    %4 = vector.load %arg4[%c0_2, %c0_3] : memref<128x1xf32, #tpu.memory_space<vmem>>, vector<128x1xf32>
    %5 = vector.broadcast %4 : vector<128x1xf32> to vector<128x32xf32>
    %6 = arith.mulf %3, %5 : vector<128x32xf32>
    %c0_4 = arith.constant 0 : index
    %c0_5 = arith.constant 0 : index
    %7 = vector.load %arg8[%c0_4, %c0_5] : memref<128x32xf32, #tpu.memory_space<vmem>>, vector<128x32xf32>
    %c0_6 = arith.constant 0 : index
    %c0_7 = arith.constant 0 : index
    %8 = vector.load %arg2[%c0_6, %c0_7] : memref<128x128xf32, #tpu.memory_space<vmem>>, vector<128x128xf32>
    %cst = arith.constant dense<0.000000e+00> : vector<128x32xf32>
    %9 = tpu.matmul %8, %6, %cst {dimension_numbers = #tpu.dot_dimension_numbers<[1], [0], [0], [1], [0, 0, 1, 1], [], []>} : vector<128x128xf32>, vector<128x32xf32>, vector<128x32xf32> -> vector<128x32xf32>
    %10 = arith.addf %7, %9 : vector<128x32xf32>
    %c0_8 = arith.constant 0 : index
    %c0_9 = arith.constant 0 : index
    %11 = vector.load %arg8[%c0_8, %c0_9] : memref<128x32xf32, #tpu.memory_space<vmem>>, vector<128x32xf32>
    tpu.vector_store %arg8[%c0_8, %c0_9], %10 {strides = array<i32>} : memref<128x32xf32, #tpu.memory_space<vmem>>, vector<128x32xf32>,
    %c0_i32_10 = arith.constant 0 : i32
    %12 = arith.cmpi eq, %arg1, %c0_i32_10 : i32
    %13 = arith.extui %12 : i1 to i32
    %c0_i32_11 = arith.constant 0 : i32
    %14 = arith.cmpi ne, %13, %c0_i32_11 : i32
    scf.if %14 {
      %c0_12 = arith.constant 0 : index
      %c0_13 = arith.constant 0 : index
      %15 = vector.load %arg8[%c0_12, %c0_13] : memref<128x32xf32, #tpu.memory_space<vmem>>, vector<128x32xf32>
      %c0_14 = arith.constant 0 : index
      %c0_15 = arith.constant 0 : index
      %16 = vector.load %arg5[%c0_14, %c0_15] : memref<32x128xf32, #tpu.memory_space<vmem>>, vector<32x128xf32>
      %cst_16 = arith.constant dense<0.000000e+00> : vector<128x128xf32>
      %17 = tpu.matmul %15, %16, %cst_16 {dimension_numbers = #tpu.dot_dimension_numbers<[1], [0], [0], [1], [0, 0, 1, 1], [], []>} : vector<128x32xf32>, vector<32x128xf32>, vector<128x128xf32> -> vector<128x128xf32>
      %c0_17 = arith.constant 0 : index
      %c0_18 = arith.constant 0 : index
      %18 = vector.load %arg6[%c0_17, %c0_18] : memref<1x128xf32, #tpu.memory_space<vmem>>, vector<1x128xf32>
      %19 = vector.broadcast %18 : vector<1x128xf32> to vector<128x128xf32>
      %20 = arith.addf %17, %19 : vector<128x128xf32>
      %cst_19 = arith.constant 0.000000e+00 : f32
      %21 = vector.broadcast %cst_19 : f32 to vector<128x128xf32>
      %22 = arith.maximumf %20, %21 : vector<128x128xf32>
      %c0_20 = arith.constant 0 : index
      %c0_21 = arith.constant 0 : index
      %23 = vector.load %arg7[%c0_20, %c0_21] : memref<128x128xf32, #tpu.memory_space<vmem>>, vector<128x128xf32>
      tpu.vector_store %arg7[%c0_20, %c0_21], %22 {strides = array<i32>} : memref<128x128xf32, #tpu.memory_space<vmem>>, vector<128x128xf32>,
    } else {
    }
    return
  }
  func.func @transform_0(%arg0: i32, %arg1: i32) -> (i32, i32) {
    %c0_i32 = arith.constant 0 : i32
    return %arg0, %arg1 : i32, i32
  }
  func.func @transform_1(%arg0: i32, %arg1: i32) -> (i32, i32) {
    %c0_i32 = arith.constant 0 : i32
    %c0_i32_0 = arith.constant 0 : i32
    return %arg1, %c0_i32 : i32, i32
  }
  func.func @transform_2(%arg0: i32, %arg1: i32) -> (i32, i32) {
    %c0_i32 = arith.constant 0 : i32
    %c0_i32_0 = arith.constant 0 : i32
    return %arg1, %c0_i32 : i32, i32
  }
  func.func @transform_3(%arg0: i32, %arg1: i32) -> (i32, i32) {
    %c0_i32 = arith.constant 0 : i32
    %c0_i32_0 = arith.constant 0 : i32
    %c0_i32_1 = arith.constant 0 : i32
    return %c0_i32, %c0_i32_0 : i32, i32
  }
  func.func @transform_4(%arg0: i32, %arg1: i32) -> (i32, i32) {
    %c0_i32 = arith.constant 0 : i32
    %c0_i32_0 = arith.constant 0 : i32
    %c0_i32_1 = arith.constant 0 : i32
    return %c0_i32, %c0_i32_0 : i32, i32
  }
  func.func @transform_5(%arg0: i32, %arg1: i32) -> (i32, i32) {
    %c0_i32 = arith.constant 0 : i32
    %c0_i32_0 = arith.constant 0 : i32
    return %arg0, %c0_i32 : i32, i32
  }
}

</mosaic_0001>

<llo_original>
// kernel: tpu_custom_call.1
$region0: #{tpu_custom_call.1}
  #allocation0 [shape = 'u32[]', space=smem, size = 0x4, offset = 0x4, fixed_abs, tag = 'smem constant byte address 0x4 - core index']
  #allocation1 [shape = 'u32[144,128]{1,0:T(1,128)}', space=vmem, size = 0x12000, scoped, tag = 'internal scratch']
  #allocation2 [shape = 'f32[128,32]{1,0:T(8,128)}', space=vmem, size = 0x10000, scoped, tag = 'scratch operand']
  %s0 = inlined_call_operand.vmem [shape: f32[128,128], index: 0, kind: input, shape index: {}]
  %s1 = inlined_call_operand.vmem [shape: f32[128,32], index: 1, kind: input, shape index: {}]
  %s2 = inlined_call_operand.vmem [shape: f32[128,1], index: 2, kind: input, shape index: {}]
  %s3 = inlined_call_operand.vmem [shape: f32[32,128], index: 3, kind: input, shape index: {}]
  %s4 = inlined_call_operand.vmem [shape: f32[1,128], index: 4, kind: input, shape index: {}]
  %s5 = inlined_call_operand.hbm [shape: f32[128,128], index: 5, kind: output, shape index: {}]
  %s6 = sld [smem:[#allocation0]]
  $region38: #{tpu_custom_call.1} parent=0
    _
  %s8 = ssub.s32 1, %s6
  %s9 = scalar_select 0, %s8, %s6
  $region1: #{tpu_custom_call.1} parent=0
    #allocation3 [shape = 'u8[65536]{0}', space=vmem, size = 0x10000, scoped, tag = 'output window, operand 0, single buffered']
    #allocation4 [shape = 's32[1]{0}', space=sflag, size = 0x4, scoped, tag = 'scoped memory for tpu_custom_call.1']
    %10 = vsyncpa [#allocation4], 0
    // Predicated region
    $region2: #{tpu_custom_call.1} parent=1 // pred_check
      _
    $region3: #{tpu_custom_call.1} parent=1 // pred_check_branch
      %12 = sbr.rel (0) target = $region5
    $region4: #{tpu_custom_call.1} parent=1 // pred_region
      _
    $region5: #{tpu_custom_call.1} parent=1 // pred_fallthru
      _
    // Predicated region
    $region6: #{tpu_custom_call.1} parent=1 // pred_check
      _
    $region7: #{tpu_custom_call.1} parent=1 // pred_check_branch
      %14 = sbr.rel (0) target = $region9
    $region8: #{tpu_custom_call.1} parent=1 // pred_region
      _
    $region9: #{tpu_custom_call.1} parent=1 // pred_fallthru
      _
    // Predicated region
    $region10: #{tpu_custom_call.1} parent=1 // pred_check
      _
    $region11: #{tpu_custom_call.1} parent=1 // pred_check_branch
      %16 = sbr.rel (0) target = $region13
    $region12: #{tpu_custom_call.1} parent=1 // pred_region
      _
    $region13: #{tpu_custom_call.1} parent=1 // pred_fallthru
      _
    // Predicated region
    $region14: #{tpu_custom_call.1} parent=1 // pred_check
      _
    $region15: #{tpu_custom_call.1} parent=1 // pred_check_branch
      %18 = sbr.rel (0) target = $region17
    $region16: #{tpu_custom_call.1} parent=1 // pred_region
      _
    $region17: #{tpu_custom_call.1} parent=1 // pred_fallthru
      _
    // Predicated region
    $region18: #{tpu_custom_call.1} parent=1 // pred_check
      _
    $region19: #{tpu_custom_call.1} parent=1 // pred_check_branch
      %20 = sbr.rel (0) target = $region21
    $region20: #{tpu_custom_call.1} parent=1 // pred_region
      _
    $region21: #{tpu_custom_call.1} parent=1 // pred_fallthru
      _
    %p21 = scmp.eq.s32.totalorder 0, 0
    // Predicated region
    $region22: #{tpu_custom_call.1} parent=1 // pred_check
      %p22 = pneg %p21
    $region23: #{tpu_custom_call.1} parent=1 // pred_check_branch
      %24 = sbr.rel (%p22) target = $region25
    $region24: #{tpu_custom_call.1} parent=1 // pred_region
      %vm25 = vcmask 261120
      %26 = vst.msk [vmem:[#allocation2] sm:$0xff] %vm25, 0.0
      %27 = vst.msk [vmem:[#allocation2 + $0x8] sm:$0xff] %vm25, 0.0
      %28 = vst.msk [vmem:[#allocation2 + $0x10] sm:$0xff] %vm25, 0.0
      %29 = vst.msk [vmem:[#allocation2 + $0x18] sm:$0xff] %vm25, 0.0
      %30 = vst.msk [vmem:[#allocation2 + $0x20] sm:$0xff] %vm25, 0.0
      %31 = vst.msk [vmem:[#allocation2 + $0x28] sm:$0xff] %vm25, 0.0
      %32 = vst.msk [vmem:[#allocation2 + $0x30] sm:$0xff] %vm25, 0.0
      %33 = vst.msk [vmem:[#allocation2 + $0x38] sm:$0xff] %vm25, 0.0
      %34 = vst.msk [vmem:[#allocation2 + $0x40] sm:$0xff] %vm25, 0.0
      %35 = vst.msk [vmem:[#allocation2 + $0x48] sm:$0xff] %vm25, 0.0
      %36 = vst.msk [vmem:[#allocation2 + $0x50] sm:$0xff] %vm25, 0.0
      %37 = vst.msk [vmem:[#allocation2 + $0x58] sm:$0xff] %vm25, 0.0
      %38 = vst.msk [vmem:[#allocation2 + $0x60] sm:$0xff] %vm25, 0.0
      %39 = vst.msk [vmem:[#allocation2 + $0x68] sm:$0xff] %vm25, 0.0
      %40 = vst.msk [vmem:[#allocation2 + $0x70] sm:$0xff] %vm25, 0.0
      %41 = vst.msk [vmem:[#allocation2 + $0x78] sm:$0xff] %vm25, 0.0
    $region25: #{tpu_custom_call.1} parent=1 // pred_fallthru
      _
    %v42 = vld [vmem:[%s1] sm:$0xff]
    %v43 = vld [vmem:[%s1 + $0x8] sm:$0xff]
    %v44 = vld [vmem:[%s1 + $0x10] sm:$0xff]
    %v45 = vld [vmem:[%s1 + $0x18] sm:$0xff]
    %v46 = vld [vmem:[%s1 + $0x20] sm:$0xff]
    %v47 = vld [vmem:[%s1 + $0x28] sm:$0xff]
    %v48 = vld [vmem:[%s1 + $0x30] sm:$0xff]
    %v49 = vld [vmem:[%s1 + $0x38] sm:$0xff]
    %v50 = vld [vmem:[%s1 + $0x40] sm:$0xff]
    %v51 = vld [vmem:[%s1 + $0x48] sm:$0xff]
    %v52 = vld [vmem:[%s1 + $0x50] sm:$0xff]
    %v53 = vld [vmem:[%s1 + $0x58] sm:$0xff]
    %v54 = vld [vmem:[%s1 + $0x60] sm:$0xff]
    %v55 = vld [vmem:[%s1 + $0x68] sm:$0xff]
    %v56 = vld [vmem:[%s1 + $0x70] sm:$0xff]
    %v57 = vld [vmem:[%s1 + $0x78] sm:$0xff]
    %v58 = vld [vmem:[%s2] sm:$0xff]
    %v59 = vld [vmem:[%s2 + $0x8] sm:$0xff]
    %v60 = vld [vmem:[%s2 + $0x10] sm:$0xff]
    %v61 = vld [vmem:[%s2 + $0x18] sm:$0xff]
    %v62 = vld [vmem:[%s2 + $0x20] sm:$0xff]
    %v63 = vld [vmem:[%s2 + $0x28] sm:$0xff]
    %v64 = vld [vmem:[%s2 + $0x30] sm:$0xff]
    %v65 = vld [vmem:[%s2 + $0x38] sm:$0xff]
    %v66 = vld [vmem:[%s2 + $0x40] sm:$0xff]
    %v67 = vld [vmem:[%s2 + $0x48] sm:$0xff]
    %v68 = vld [vmem:[%s2 + $0x50] sm:$0xff]
    %v69 = vld [vmem:[%s2 + $0x58] sm:$0xff]
    %v70 = vld [vmem:[%s2 + $0x60] sm:$0xff]
    %v71 = vld [vmem:[%s2 + $0x68] sm:$0xff]
    %v72 = vld [vmem:[%s2 + $0x70] sm:$0xff]
    %v73 = vld [vmem:[%s2 + $0x78] sm:$0xff]
    %75 = vset.pattern.permute.xlu0 0
    %76 = vperm.xlu0 %75, %v58
    %v77 = vpop.permute.xlu0 %76
    %80 = vset.pattern.permute.xlu0 0
    %81 = vperm.xlu0 %80, %v59
    %v82 = vpop.permute.xlu0 %81
    %85 = vset.pattern.permute.xlu0 0
    %86 = vperm.xlu0 %85, %v60
    %v87 = vpop.permute.xlu0 %86
    %90 = vset.pattern.permute.xlu0 0
    %91 = vperm.xlu0 %90, %v61
    %v92 = vpop.permute.xlu0 %91
    %95 = vset.pattern.permute.xlu0 0
    %96 = vperm.xlu0 %95, %v62
    %v97 = vpop.permute.xlu0 %96
    %100 = vset.pattern.permute.xlu0 0
    %101 = vperm.xlu0 %100, %v63
    %v102 = vpop.permute.xlu0 %101
    %105 = vset.pattern.permute.xlu0 0
    %106 = vperm.xlu0 %105, %v64
    %v107 = vpop.permute.xlu0 %106
    %110 = vset.pattern.permute.xlu0 0
    %111 = vperm.xlu0 %110, %v65
    %v112 = vpop.permute.xlu0 %111
    %115 = vset.pattern.permute.xlu0 0
    %116 = vperm.xlu0 %115, %v66
    %v117 = vpop.permute.xlu0 %116
    %120 = vset.pattern.permute.xlu0 0
    %121 = vperm.xlu0 %120, %v67
    %v122 = vpop.permute.xlu0 %121
    %125 = vset.pattern.permute.xlu0 0
    %126 = vperm.xlu0 %125, %v68
    %v127 = vpop.permute.xlu0 %126
    %130 = vset.pattern.permute.xlu0 0
    %131 = vperm.xlu0 %130, %v69
    %v132 = vpop.permute.xlu0 %131
    %135 = vset.pattern.permute.xlu0 0
    %136 = vperm.xlu0 %135, %v70
    %v137 = vpop.permute.xlu0 %136
    %140 = vset.pattern.permute.xlu0 0
    %141 = vperm.xlu0 %140, %v71
    %v142 = vpop.permute.xlu0 %141
    %145 = vset.pattern.permute.xlu0 0
    %146 = vperm.xlu0 %145, %v72
    %v147 = vpop.permute.xlu0 %146
    %150 = vset.pattern.permute.xlu0 0
    %151 = vperm.xlu0 %150, %v73
    %v152 = vpop.permute.xlu0 %151
    %v154 = vmul.f32 %v42, %v77
    %v155 = vmul.f32 %v43, %v82
    %v156 = vmul.f32 %v44, %v87
    %v157 = vmul.f32 %v45, %v92
    %v158 = vmul.f32 %v46, %v97
    %v159 = vmul.f32 %v47, %v102
    %v160 = vmul.f32 %v48, %v107
    %v161 = vmul.f32 %v49, %v112
    %v162 = vmul.f32 %v50, %v117
    %v163 = vmul.f32 %v51, %v122
    %v164 = vmul.f32 %v52, %v127
    %v165 = vmul.f32 %v53, %v132
    %v166 = vmul.f32 %v54, %v137
    %v167 = vmul.f32 %v55, %v142
    %v168 = vmul.f32 %v56, %v147
    %v169 = vmul.f32 %v57, %v152
    %v170 = vld [vmem:[#allocation2] sm:$0xff]
    %v171 = vld [vmem:[#allocation2 + $0x8] sm:$0xff]
    %v172 = vld [vmem:[#allocation2 + $0x10] sm:$0xff]
    %v173 = vld [vmem:[#allocation2 + $0x18] sm:$0xff]
    %v174 = vld [vmem:[#allocation2 + $0x20] sm:$0xff]
    %v175 = vld [vmem:[#allocation2 + $0x28] sm:$0xff]
    %v176 = vld [vmem:[#allocation2 + $0x30] sm:$0xff]
    %v177 = vld [vmem:[#allocation2 + $0x38] sm:$0xff]
    %v178 = vld [vmem:[#allocation2 + $0x40] sm:$0xff]
    %v179 = vld [vmem:[#allocation2 + $0x48] sm:$0xff]
    %v180 = vld [vmem:[#allocation2 + $0x50] sm:$0xff]
    %v181 = vld [vmem:[#allocation2 + $0x58] sm:$0xff]
    %v182 = vld [vmem:[#allocation2 + $0x60] sm:$0xff]
    %v183 = vld [vmem:[#allocation2 + $0x68] sm:$0xff]
    %v184 = vld [vmem:[#allocation2 + $0x70] sm:$0xff]
    %v185 = vld [vmem:[#allocation2 + $0x78] sm:$0xff]
    %v186 = vld [vmem:[%s0] sm:$0xff]
    %v187 = vld [vmem:[%s0 + $0x8] sm:$0xff]
    %v188 = vld [vmem:[%s0 + $0x10] sm:$0xff]
    %v189 = vld [vmem:[%s0 + $0x18] sm:$0xff]
    %v190 = vld [vmem:[%s0 + $0x20] sm:$0xff]
    %v191 = vld [vmem:[%s0 + $0x28] sm:$0xff]
    %v192 = vld [vmem:[%s0 + $0x30] sm:$0xff]
    %v193 = vld [vmem:[%s0 + $0x38] sm:$0xff]
    %v194 = vld [vmem:[%s0 + $0x40] sm:$0xff]
    %v195 = vld [vmem:[%s0 + $0x48] sm:$0xff]
    %v196 = vld [vmem:[%s0 + $0x50] sm:$0xff]
    %v197 = vld [vmem:[%s0 + $0x58] sm:$0xff]
    %v198 = vld [vmem:[%s0 + $0x60] sm:$0xff]
    %v199 = vld [vmem:[%s0 + $0x68] sm:$0xff]
    %v200 = vld [vmem:[%s0 + $0x70] sm:$0xff]
    %v201 = vld [vmem:[%s0 + $0x78] sm:$0xff]
    %202 = vmatprep.subr.mxu0 0.0
    %203 = vmatpush1.msra.mxu0 %v154
    %204 = vmatprep.subr.mxu0 0.0
    %205 = vmatpush1.msra.mxu0 %v155
    %206 = vmatprep.subr.mxu0 0.0
    %207 = vmatpush1.msra.mxu0 %v156
    %208 = vmatprep.subr.mxu0 0.0
    %209 = vmatpush1.msra.mxu0 %v157
    %210 = vmatprep.subr.mxu0 0.0
    %211 = vmatpush1.msra.mxu0 %v158
    %212 = vmatprep.subr.mxu0 0.0
    %213 = vmatpush1.msra.mxu0 %v159
    %214 = vmatprep.subr.mxu0 0.0
    %215 = vmatpush1.msra.mxu0 %v160
    %216 = vmatprep.subr.mxu0 0.0
    %217 = vmatpush1.msra.mxu0 %v161
    %218 = vmatprep.subr.mxu0 0.0
    %219 = vmatpush1.msra.mxu0 %v162
    %220 = vmatprep.subr.mxu0 0.0
    %221 = vmatpush1.msra.mxu0 %v163
    %222 = vmatprep.subr.mxu0 0.0
    %223 = vmatpush1.msra.mxu0 %v164
    %224 = vmatprep.subr.mxu0 0.0
    %225 = vmatpush1.msra.mxu0 %v165
    %226 = vmatprep.subr.mxu0 0.0
    %227 = vmatpush1.msra.mxu0 %v166
    %228 = vmatprep.subr.mxu0 0.0
    %229 = vmatpush1.msra.mxu0 %v167
    %230 = vmatprep.subr.mxu0 0.0
    %231 = vmatpush1.msra.mxu0 %v168
    %232 = vmatprep.subr.mxu0 0.0
    %233 = vmatpush1.msra.mxu0 %v169
    %234 = vmatprep.subr.mxu0 0.0
    %235 = vmatpush1.msra.mxu0 0.0
    %236 = vmatprep.subr.mxu0 0.0
    %237 = vmatpush1.msra.mxu0 0.0
    %238 = vmatprep.subr.mxu0 0.0
    %239 = vmatpush1.msra.mxu0 0.0
    %240 = vmatprep.subr.mxu0 0.0
    %241 = vmatpush1.msra.mxu0 0.0
    %242 = vmatprep.subr.mxu0 0.0
    %243 = vmatpush1.msra.mxu0 0.0
    %244 = vmatprep.subr.mxu0 0.0
    %245 = vmatpush1.msra.mxu0 0.0
    %246 = vmatprep.subr.mxu0 0.0
    %247 = vmatpush1.msra.mxu0 0.0
    %248 = vmatprep.subr.mxu0 0.0
    %249 = vmatpush1.msra.mxu0 0.0
    %250 = vmatprep.subr.mxu0 0.0
    %251 = vmatpush1.msra.mxu0 0.0
    %252 = vmatprep.subr.mxu0 0.0
    %253 = vmatpush1.msra.mxu0 0.0
    %254 = vmatprep.subr.mxu0 0.0
    %255 = vmatpush1.msra.mxu0 0.0
    %256 = vmatprep.subr.mxu0 0.0
    %257 = vmatpush1.msra.mxu0 0.0
    %258 = vmatprep.subr.mxu0 0.0
    %259 = vmatpush1.msra.mxu0 0.0
    %260 = vmatprep.subr.mxu0 0.0
    %261 = vmatpush1.msra.mxu0 0.0
    %262 = vmatprep.subr.mxu0 0.0
    %263 = vmatpush1.msra.mxu0 0.0
    %264 = vmatprep.subr.mxu0 0.0
    %265 = vmatpush1.msra.mxu0 0.0
    %266 = vmatprep.mubr.f32.mxu0 0.0
    %267 = vmatmul.mubr.f32.gmra.mrb[0].mxu0 %v186
    %v268 = vpop.f32.mrb[0].mxu0
    %v269 = vadd.f32 0.0, %v268
    %v270 = vpop.f32.mrb[0].mxu0
    %271 = vmatprep.mubr.f32.mxu0 0.0
    %272 = vmatmul.mubr.f32.gmra.mrb[0].mxu0 %v187
    %v273 = vpop.f32.mrb[0].mxu0
    %v274 = vadd.f32 0.0, %v273
    %v275 = vpop.f32.mrb[0].mxu0
    %276 = vmatprep.mubr.f32.mxu0 0.0
    %277 = vmatmul.mubr.f32.gmra.mrb[0].mxu0 %v188
    %v278 = vpop.f32.mrb[0].mxu0
    %v279 = vadd.f32 0.0, %v278
    %v280 = vpop.f32.mrb[0].mxu0
    %281 = vmatprep.mubr.f32.mxu0 0.0
    %282 = vmatmul.mubr.f32.gmra.mrb[0].mxu0 %v189
    %v283 = vpop.f32.mrb[0].mxu0
    %v284 = vadd.f32 0.0, %v283
    %v285 = vpop.f32.mrb[0].mxu0
    %286 = vmatprep.mubr.f32.mxu0 0.0
    %287 = vmatmul.mubr.f32.gmra.mrb[0].mxu0 %v190
    %v288 = vpop.f32.mrb[0].mxu0
    %v289 = vadd.f32 0.0, %v288
    %v290 = vpop.f32.mrb[0].mxu0
    %291 = vmatprep.mubr.f32.mxu0 0.0
    %292 = vmatmul.mubr.f32.gmra.mrb[0].mxu0 %v191
    %v293 = vpop.f32.mrb[0].mxu0
    %v294 = vadd.f32 0.0, %v293
    %v295 = vpop.f32.mrb[0].mxu0
    %296 = vmatprep.mubr.f32.mxu0 0.0
    %297 = vmatmul.mubr.f32.gmra.mrb[0].mxu0 %v192
    %v298 = vpop.f32.mrb[0].mxu0
    %v299 = vadd.f32 0.0, %v298
    %v300 = vpop.f32.mrb[0].mxu0
    %301 = vmatprep.mubr.f32.mxu0 0.0
    %302 = vmatmul.mubr.f32.gmra.mrb[0].mxu0 %v193
    %v303 = vpop.f32.mrb[0].mxu0
    %v304 = vadd.f32 0.0, %v303
    %v305 = vpop.f32.mrb[0].mxu0
    %306 = vmatprep.mubr.f32.mxu0 0.0
    %307 = vmatmul.mubr.f32.gmra.mrb[0].mxu0 %v194
    %v308 = vpop.f32.mrb[0].mxu0
    %v309 = vadd.f32 0.0, %v308
    %v310 = vpop.f32.mrb[0].mxu0
    %311 = vmatprep.mubr.f32.mxu0 0.0
    %312 = vmatmul.mubr.f32.gmra.mrb[0].mxu0 %v195
    %v313 = vpop.f32.mrb[0].mxu0
    %v314 = vadd.f32 0.0, %v313
    %v315 = vpop.f32.mrb[0].mxu0
    %316 = vmatprep.mubr.f32.mxu0 0.0
    %317 = vmatmul.mubr.f32.gmra.mrb[0].mxu0 %v196
    %v318 = vpop.f32.mrb[0].mxu0
    %v319 = vadd.f32 0.0, %v318
    %v320 = vpop.f32.mrb[0].mxu0
    %321 = vmatprep.mubr.f32.mxu0 0.0
    %322 = vmatmul.mubr.f32.gmra.mrb[0].mxu0 %v197
    %v323 = vpop.f32.mrb[0].mxu0
    %v324 = vadd.f32 0.0, %v323
    %v325 = vpop.f32.mrb[0].mxu0
    %326 = vmatprep.mubr.f32.mxu0 0.0
    %327 = vmatmul.mubr.f32.gmra.mrb[0].mxu0 %v198
    %v328 = vpop.f32.mrb[0].mxu0
    %v329 = vadd.f32 0.0, %v328
    %v330 = vpop.f32.mrb[0].mxu0
    %331 = vmatprep.mubr.f32.mxu0 0.0
    %332 = vmatmul.mubr.f32.gmra.mrb[0].mxu0 %v199
    %v333 = vpop.f32.mrb[0].mxu0
    %v334 = vadd.f32 0.0, %v333
    %v335 = vpop.f32.mrb[0].mxu0
    %336 = vmatprep.mubr.f32.mxu0 0.0
    %337 = vmatmul.mubr.f32.gmra.mrb[0].mxu0 %v200
    %v338 = vpop.f32.mrb[0].mxu0
    %v339 = vadd.f32 0.0, %v338
    %v340 = vpop.f32.mrb[0].mxu0
    %341 = vmatprep.mubr.f32.mxu0 0.0
    %342 = vmatmul.mubr.f32.gmra.mrb[0].mxu0 %v201
    %v343 = vpop.f32.mrb[0].mxu0
    %v344 = vadd.f32 0.0, %v343
    %v345 = vpop.f32.mrb[0].mxu0
    %346 = vdwg.mxu0
    %v347 = vadd.f32 %v170, %v269
    %v348 = vadd.f32 %v171, %v274
    %v349 = vadd.f32 %v172, %v279
    %v350 = vadd.f32 %v173, %v284
    %v351 = vadd.f32 %v174, %v289
    %v352 = vadd.f32 %v175, %v294
    %v353 = vadd.f32 %v176, %v299
    %v354 = vadd.f32 %v177, %v304
    %v355 = vadd.f32 %v178, %v309
    %v356 = vadd.f32 %v179, %v314
    %v357 = vadd.f32 %v180, %v319
    %v358 = vadd.f32 %v181, %v324
    %v359 = vadd.f32 %v182, %v329
    %v360 = vadd.f32 %v183, %v334
    %v361 = vadd.f32 %v184, %v339
    %v362 = vadd.f32 %v185, %v344
    %vm363 = vcmask 261120
    %364 = vst.msk [vmem:[#allocation2] sm:$0xff] %vm363, %v347
    %365 = vst.msk [vmem:[#allocation2 + $0x8] sm:$0xff] %vm363, %v348
    %366 = vst.msk [vmem:[#allocation2 + $0x10] sm:$0xff] %vm363, %v349
    %367 = vst.msk [vmem:[#allocation2 + $0x18] sm:$0xff] %vm363, %v350
    %368 = vst.msk [vmem:[#allocation2 + $0x20] sm:$0xff] %vm363, %v351
    %369 = vst.msk [vmem:[#allocation2 + $0x28] sm:$0xff] %vm363, %v352
    %370 = vst.msk [vmem:[#allocation2 + $0x30] sm:$0xff] %vm363, %v353
    %371 = vst.msk [vmem:[#allocation2 + $0x38] sm:$0xff] %vm363, %v354
    %372 = vst.msk [vmem:[#allocation2 + $0x40] sm:$0xff] %vm363, %v355
    %373 = vst.msk [vmem:[#allocation2 + $0x48] sm:$0xff] %vm363, %v356
    %374 = vst.msk [vmem:[#allocation2 + $0x50] sm:$0xff] %vm363, %v357
    %375 = vst.msk [vmem:[#allocation2 + $0x58] sm:$0xff] %vm363, %v358
    %376 = vst.msk [vmem:[#allocation2 + $0x60] sm:$0xff] %vm363, %v359
    %377 = vst.msk [vmem:[#allocation2 + $0x68] sm:$0xff] %vm363, %v360
    %378 = vst.msk [vmem:[#allocation2 + $0x70] sm:$0xff] %vm363, %v361
    %379 = vst.msk [vmem:[#allocation2 + $0x78] sm:$0xff] %vm363, %v362
    // Predicated region
    $region26: #{tpu_custom_call.1} parent=1 // pred_check
      %p380 = pneg %p21
    $region27: #{tpu_custom_call.1} parent=1 // pred_check_branch
      %382 = sbr.rel (%p380) target = $region29
    $region28: #{tpu_custom_call.1} parent=1 // pred_region
      %v383 = vld [vmem:[#allocation2] sm:$0xff]
      %v384 = vld [vmem:[#allocation2 + $0x8] sm:$0xff]
      %v385 = vld [vmem:[#allocation2 + $0x10] sm:$0xff]
      %v386 = vld [vmem:[#allocation2 + $0x18] sm:$0xff]
      %v387 = vld [vmem:[#allocation2 + $0x20] sm:$0xff]
      %v388 = vld [vmem:[#allocation2 + $0x28] sm:$0xff]
      %v389 = vld [vmem:[#allocation2 + $0x30] sm:$0xff]
      %v390 = vld [vmem:[#allocation2 + $0x38] sm:$0xff]
      %v391 = vld [vmem:[#allocation2 + $0x40] sm:$0xff]
      %v392 = vld [vmem:[#allocation2 + $0x48] sm:$0xff]
      %v393 = vld [vmem:[#allocation2 + $0x50] sm:$0xff]
      %v394 = vld [vmem:[#allocation2 + $0x58] sm:$0xff]
      %v395 = vld [vmem:[#allocation2 + $0x60] sm:$0xff]
      %v396 = vld [vmem:[#allocation2 + $0x68] sm:$0xff]
      %v397 = vld [vmem:[#allocation2 + $0x70] sm:$0xff]
      %v398 = vld [vmem:[#allocation2 + $0x78] sm:$0xff]
      %v399 = vld [vmem:[%s3] sm:$0xff]
      %v400 = vld [vmem:[%s3 + $0x8] sm:$0xff]
      %v401 = vld [vmem:[%s3 + $0x10] sm:$0xff]
      %v402 = vld [vmem:[%s3 + $0x18] sm:$0xff]
      %v403 = vld [vmem:[%s4] sm:$0x1]
      %v405 = vlaneseq
      %v406 = vshrl.u32 %v405, 7
      %v407 = vsub.s32 0, %v406
      %v408 = vrot.slane %v403, %v407
      %v411 = vsel %vm363, %v383, 0
      %v414 = vsel %vm363, %v384, 0
      %v417 = vsel %vm363, %v385, 0
      %v420 = vsel %vm363, %v386, 0
      %v423 = vsel %vm363, %v387, 0
      %v426 = vsel %vm363, %v388, 0
      %v429 = vsel %vm363, %v389, 0
      %v432 = vsel %vm363, %v390, 0
      %v435 = vsel %vm363, %v391, 0
      %v438 = vsel %vm363, %v392, 0
      %v441 = vsel %vm363, %v393, 0
      %v444 = vsel %vm363, %v394, 0
      %v447 = vsel %vm363, %v395, 0
      %v450 = vsel %vm363, %v396, 0
      %v453 = vsel %vm363, %v397, 0
      %v456 = vsel %vm363, %v398, 0
      %458 = vmatprep.subr.mxu0 0.0
      %459 = vmatpush1.msra.mxu0 %v399
      %460 = vmatprep.subr.mxu0 0.0
      %461 = vmatpush1.msra.mxu0 %v400
      %462 = vmatprep.subr.mxu0 0.0
      %463 = vmatpush1.msra.mxu0 %v401
      %464 = vmatprep.subr.mxu0 0.0
      %465 = vmatpush1.msra.mxu0 %v402
      %466 = vmatprep.subr.mxu0 0.0
      %467 = vmatpush1.msra.mxu0 0.0
      %468 = vmatprep.subr.mxu0 0.0
      %469 = vmatpush1.msra.mxu0 0.0
      %470 = vmatprep.subr.mxu0 0.0
      %471 = vmatpush1.msra.mxu0 0.0
      %472 = vmatprep.subr.mxu0 0.0
      %473 = vmatpush1.msra.mxu0 0.0
      %474 = vmatprep.subr.mxu0 0.0
      %475 = vmatpush1.msra.mxu0 0.0
      %476 = vmatprep.subr.mxu0 0.0
      %477 = vmatpush1.msra.mxu0 0.0
      %478 = vmatprep.subr.mxu0 0.0
      %479 = vmatpush1.msra.mxu0 0.0
      %480 = vmatprep.subr.mxu0 0.0
      %481 = vmatpush1.msra.mxu0 0.0
      %482 = vmatprep.subr.mxu0 0.0
      %483 = vmatpush1.msra.mxu0 0.0
      %484 = vmatprep.subr.mxu0 0.0
      %485 = vmatpush1.msra.mxu0 0.0
      %486 = vmatprep.subr.mxu0 0.0
      %487 = vmatpush1.msra.mxu0 0.0
      %488 = vmatprep.subr.mxu0 0.0
      %489 = vmatpush1.msra.mxu0 0.0
      %490 = vmatprep.subr.mxu0 0.0
      %491 = vmatpush1.msra.mxu0 0.0
      %492 = vmatprep.subr.mxu0 0.0
      %493 = vmatpush1.msra.mxu0 0.0
      %494 = vmatprep.subr.mxu0 0.0
      %495 = vmatpush1.msra.mxu0 0.0
      %496 = vmatprep.subr.mxu0 0.0
      %497 = vmatpush1.msra.mxu0 0.0
      %498 = vmatprep.subr.mxu0 0.0
      %499 = vmatpush1.msra.mxu0 0.0
      %500 = vmatprep.subr.mxu0 0.0
      %501 = vmatpush1.msra.mxu0 0.0
      %502 = vmatprep.subr.mxu0 0.0
      %503 = vmatpush1.msra.mxu0 0.0
      %504 = vmatprep.subr.mxu0 0.0
      %505 = vmatpush1.msra.mxu0 0.0
      %506 = vmatprep.subr.mxu0 0.0
      %507 = vmatpush1.msra.mxu0 0.0
      %508 = vmatprep.subr.mxu0 0.0
      %509 = vmatpush1.msra.mxu0 0.0
      %510 = vmatprep.subr.mxu0 0.0
      %511 = vmatpush1.msra.mxu0 0.0
      %512 = vmatprep.subr.mxu0 0.0
      %513 = vmatpush1.msra.mxu0 0.0
      %514 = vmatprep.subr.mxu0 0.0
      %515 = vmatpush1.msra.mxu0 0.0
      %516 = vmatprep.subr.mxu0 0.0
      %517 = vmatpush1.msra.mxu0 0.0
      %518 = vmatprep.subr.mxu0 0.0
      %519 = vmatpush1.msra.mxu0 0.0
      %520 = vmatprep.subr.mxu0 0.0
      %521 = vmatpush1.msra.mxu0 0.0
      %522 = vmatprep.mubr.f32.mxu0 0.0
      %523 = vmatmul.mubr.f32.gmra.mrb[0].mxu0 %v411
      %v524 = vpop.f32.mrb[0].mxu0
      %v525 = vadd.f32 %v408, %v524
      %v526 = vpop.f32.mrb[0].mxu0
      %527 = vmatprep.mubr.f32.mxu0 0.0
      %528 = vmatmul.mubr.f32.gmra.mrb[0].mxu0 %v414
      %v529 = vpop.f32.mrb[0].mxu0
      %v530 = vadd.f32 %v408, %v529
      %v531 = vpop.f32.mrb[0].mxu0
      %532 = vmatprep.mubr.f32.mxu0 0.0
      %533 = vmatmul.mubr.f32.gmra.mrb[0].mxu0 %v417
      %v534 = vpop.f32.mrb[0].mxu0
      %v535 = vadd.f32 %v408, %v534
      %v536 = vpop.f32.mrb[0].mxu0
      %537 = vmatprep.mubr.f32.mxu0 0.0
      %538 = vmatmul.mubr.f32.gmra.mrb[0].mxu0 %v420
      %v539 = vpop.f32.mrb[0].mxu0
      %v540 = vadd.f32 %v408, %v539
      %v541 = vpop.f32.mrb[0].mxu0
      %542 = vmatprep.mubr.f32.mxu0 0.0
      %543 = vmatmul.mubr.f32.gmra.mrb[0].mxu0 %v423
      %v544 = vpop.f32.mrb[0].mxu0
      %v545 = vadd.f32 %v408, %v544
      %v546 = vpop.f32.mrb[0].mxu0
      %547 = vmatprep.mubr.f32.mxu0 0.0
      %548 = vmatmul.mubr.f32.gmra.mrb[0].mxu0 %v426
      %v549 = vpop.f32.mrb[0].mxu0
      %v550 = vadd.f32 %v408, %v549
      %v551 = vpop.f32.mrb[0].mxu0
      %552 = vmatprep.mubr.f32.mxu0 0.0
      %553 = vmatmul.mubr.f32.gmra.mrb[0].mxu0 %v429
      %v554 = vpop.f32.mrb[0].mxu0
      %v555 = vadd.f32 %v408, %v554
      %v556 = vpop.f32.mrb[0].mxu0
      %557 = vmatprep.mubr.f32.mxu0 0.0
      %558 = vmatmul.mubr.f32.gmra.mrb[0].mxu0 %v432
      %v559 = vpop.f32.mrb[0].mxu0
      %v560 = vadd.f32 %v408, %v559
      %v561 = vpop.f32.mrb[0].mxu0
      %562 = vmatprep.mubr.f32.mxu0 0.0
      %563 = vmatmul.mubr.f32.gmra.mrb[0].mxu0 %v435
      %v564 = vpop.f32.mrb[0].mxu0
      %v565 = vadd.f32 %v408, %v564
      %v566 = vpop.f32.mrb[0].mxu0
      %567 = vmatprep.mubr.f32.mxu0 0.0
      %568 = vmatmul.mubr.f32.gmra.mrb[0].mxu0 %v438
      %v569 = vpop.f32.mrb[0].mxu0
      %v570 = vadd.f32 %v408, %v569
      %v571 = vpop.f32.mrb[0].mxu0
      %572 = vmatprep.mubr.f32.mxu0 0.0
      %573 = vmatmul.mubr.f32.gmra.mrb[0].mxu0 %v441
      %v574 = vpop.f32.mrb[0].mxu0
      %v575 = vadd.f32 %v408, %v574
      %v576 = vpop.f32.mrb[0].mxu0
      %577 = vmatprep.mubr.f32.mxu0 0.0
      %578 = vmatmul.mubr.f32.gmra.mrb[0].mxu0 %v444
      %v579 = vpop.f32.mrb[0].mxu0
      %v580 = vadd.f32 %v408, %v579
      %v581 = vpop.f32.mrb[0].mxu0
      %582 = vmatprep.mubr.f32.mxu0 0.0
      %583 = vmatmul.mubr.f32.gmra.mrb[0].mxu0 %v447
      %v584 = vpop.f32.mrb[0].mxu0
      %v585 = vadd.f32 %v408, %v584
      %v586 = vpop.f32.mrb[0].mxu0
      %587 = vmatprep.mubr.f32.mxu0 0.0
      %588 = vmatmul.mubr.f32.gmra.mrb[0].mxu0 %v450
      %v589 = vpop.f32.mrb[0].mxu0
      %v590 = vadd.f32 %v408, %v589
      %v591 = vpop.f32.mrb[0].mxu0
      %592 = vmatprep.mubr.f32.mxu0 0.0
      %593 = vmatmul.mubr.f32.gmra.mrb[0].mxu0 %v453
      %v594 = vpop.f32.mrb[0].mxu0
      %v595 = vadd.f32 %v408, %v594
      %v596 = vpop.f32.mrb[0].mxu0
      %597 = vmatprep.mubr.f32.mxu0 0.0
      %598 = vmatmul.mubr.f32.gmra.mrb[0].mxu0 %v456
      %v599 = vpop.f32.mrb[0].mxu0
      %v600 = vadd.f32 %v408, %v599
      %v601 = vpop.f32.mrb[0].mxu0
      %602 = vdwg.mxu0
      %v603 = vmax.f32 %v525, 0.0
      %v604 = vmax.f32 %v530, 0.0
      %v605 = vmax.f32 %v535, 0.0
      %v606 = vmax.f32 %v540, 0.0
      %v607 = vmax.f32 %v545, 0.0
      %v608 = vmax.f32 %v550, 0.0
      %v609 = vmax.f32 %v555, 0.0
      %v610 = vmax.f32 %v560, 0.0
      %v611 = vmax.f32 %v565, 0.0
      %v612 = vmax.f32 %v570, 0.0
      %v613 = vmax.f32 %v575, 0.0
      %v614 = vmax.f32 %v580, 0.0
      %v615 = vmax.f32 %v585, 0.0
      %v616 = vmax.f32 %v590, 0.0
      %v617 = vmax.f32 %v595, 0.0
      %v618 = vmax.f32 %v600, 0.0
      %619 = vst [vmem:[#allocation3] sm:$0xff] %v603
      %620 = vst [vmem:[#allocation3 + $0x8] sm:$0xff] %v604
      %621 = vst [vmem:[#allocation3 + $0x10] sm:$0xff] %v605
      %622 = vst [vmem:[#allocation3 + $0x18] sm:$0xff] %v606
      %623 = vst [vmem:[#allocation3 + $0x20] sm:$0xff] %v607
      %624 = vst [vmem:[#allocation3 + $0x28] sm:$0xff] %v608
      %625 = vst [vmem:[#allocation3 + $0x30] sm:$0xff] %v609
      %626 = vst [vmem:[#allocation3 + $0x38] sm:$0xff] %v610
      %627 = vst [vmem:[#allocation3 + $0x40] sm:$0xff] %v611
      %628 = vst [vmem:[#allocation3 + $0x48] sm:$0xff] %v612
      %629 = vst [vmem:[#allocation3 + $0x50] sm:$0xff] %v613
      %630 = vst [vmem:[#allocation3 + $0x58] sm:$0xff] %v614
      %631 = vst [vmem:[#allocation3 + $0x60] sm:$0xff] %v615
      %632 = vst [vmem:[#allocation3 + $0x68] sm:$0xff] %v616
      %633 = vst [vmem:[#allocation3 + $0x70] sm:$0xff] %v617
      %634 = vst [vmem:[#allocation3 + $0x78] sm:$0xff] %v618
    $region29: #{tpu_custom_call.1} parent=1 // pred_fallthru
      _
    // Predicated region
    $region30: #{tpu_custom_call.1} parent=1 // pred_check
      _
    $region31: #{tpu_custom_call.1} parent=1 // pred_check_branch
      %636 = sbr.rel (0) target = $region33
    $region32: #{tpu_custom_call.1} parent=1 // pred_region
      %s638 = ssub.s32 2048, 2048
      %639 = vsyncadd [#allocation4], %s638
      %s640 = sshll.u32 [#allocation3], 4
      %s641 = int_to_ptr.vmem [resolvable:$true] %s640
      %646 = dma.vmem_to_hbm [thread:$0]  %s641, 2048, %s5, [#allocation4], 128, 128, 8
    $region33: #{tpu_custom_call.1} parent=1 // pred_fallthru
      _
    // Predicated region
    $region34: #{tpu_custom_call.1} parent=1 // pred_check
      _
    $region35: #{tpu_custom_call.1} parent=1 // pred_check_branch
      %648 = sbr.rel (0) target = $region37
    $region36: #{tpu_custom_call.1} parent=1 // pred_region
      %649 = dma.done [#allocation4], 2048
    $region37: #{tpu_custom_call.1} parent=1 // pred_fallthru
      _
    %650 = vsyncpa [#allocation4], 1

</llo_original>
